<compile_context>
chip_gen: v6e
topology: v6e:2x2x1
jax: 0.10.0
libtpu: 0.0.40
codegen_flags: <defaults>
</compile_context>

<pallas_src>
import functools

import jax
import jax.numpy as jnp
from jax.experimental import pallas as pl
from jax.experimental.pallas import tpu as pltpu


def _round_up(x, m):
    return ((x + m - 1) // m) * m


# ----------------------------------------------------------------------------
# Kernel bodies
# ----------------------------------------------------------------------------
def _mlp_body(x_ref, wg_ref, wi_ref, w3_ref, out_ref, xinp_ref, acc_ref):
    k = pl.program_id(1)

    @pl.when(k == 0)
    def _():
        acc_ref[...] = jnp.zeros_like(acc_ref)

    x = x_ref[...]                                                        # (tm, E)   bf16
    gate = jnp.dot(x, wg_ref[...], preferred_element_type=jnp.float32)    # (tm, ti)  f32
    inp = jnp.dot(x, wi_ref[...], preferred_element_type=jnp.float32)     # (tm, ti)  f32
    h = (gate * jax.nn.sigmoid(gate)) * inp                               # swiglu, f32
    acc_ref[...] += jnp.dot(h.astype(w3_ref.dtype), w3_ref[...],
                            preferred_element_type=jnp.float32)           # (tm, E)   f32

    if xinp_ref is not None:
        xinp_ref[...] = inp.astype(xinp_ref.dtype)

    @pl.when(k == pl.num_programs(1) - 1)
    def _():
        out_ref[...] = acc_ref[...].astype(out_ref.dtype)


def _mlp_kernel_with_xinp(x_ref, wg_ref, wi_ref, w3_ref, out_ref, xinp_ref, acc_ref):
    _mlp_body(x_ref, wg_ref, wi_ref, w3_ref, out_ref, xinp_ref, acc_ref)


def _mlp_kernel_no_xinp(x_ref, wg_ref, wi_ref, w3_ref, out_ref, acc_ref):
    _mlp_body(x_ref, wg_ref, wi_ref, w3_ref, out_ref, None, acc_ref)


# ----------------------------------------------------------------------------
# Host wrapper
# ----------------------------------------------------------------------------
@functools.partial(jax.jit,
                   static_argnames=("emit_x_inp", "tm", "ti", "compute_dtype"))
def llama_mlp_pallas(x2d, wg, wi, w3, *, emit_x_inp=False, tm=256, ti=512,
                     compute_dtype=jnp.bfloat16):
    """x2d: (M, E); wg, wi: (E, I); w3: (I, E).

    Returns (out (M, E) in x2d.dtype, x_inp (M, I) or None)."""
    M, E = x2d.shape
    I = wg.shape[1]
    assert wg.shape == (E, I) and wi.shape == (E, I) and w3.shape == (I, E)
    out_dtype = x2d.dtype

    # bf16 operands for the MXU (f32 accumulation inside the kernel).
    x2d = x2d.astype(compute_dtype)
    wg = wg.astype(compute_dtype)
    wi = wi.astype(compute_dtype)
    w3 = w3.astype(compute_dtype)

    # --- row tile: big tiles for MXU occupancy, pad the tail --------------
    tm_eff = min(tm, _round_up(M, 8))
    mpad = _round_up(M, tm_eff)
    if mpad != M:
        x2d = jnp.pad(x2d, ((0, mpad - M), (0, 0)))

    # --- intermediate-dim tile: stream weights in I-chunks ---------------
    if I <= ti:
        ti_eff = I          # full dim (exempt from the 128-lane rule)
        ipad = I
    else:
        ti_eff = ti         # 128-aligned chunk
        ipad = _round_up(I, ti_eff)
    if ipad != I:
        # zero-padding the I axis is exact: padded gate/inp columns are 0 and
        # the matching W3 rows are 0, contributing nothing to the output.
        wg = jnp.pad(wg, ((0, 0), (0, ipad - I)))
        wi = jnp.pad(wi, ((0, 0), (0, ipad - I)))
        w3 = jnp.pad(w3, ((0, ipad - I), (0, 0)))

    grid = (mpad // tm_eff, ipad // ti_eff)

    # --- VMEM budget (per-step footprint, double buffers included) --------
    itm = jnp.dtype(compute_dtype).itemsize
    ito = jnp.dtype(out_dtype).itemsize
    est = (2 * tm_eff * E * itm          # x tile
           + 2 * 2 * E * ti_eff * itm    # wg + wi tiles
           + 2 * ti_eff * E * itm        # w3 tile
           + 2 * tm_eff * E * ito        # out tile
           + tm_eff * E * 4              # f32 accumulator scratch
           + 3 * tm_eff * ti_eff * 4)    # gate / inp / h temporaries
    if emit_x_inp:
        est += 2 * tm_eff * ti_eff * ito
    vmem_limit = int(min(max(int(est * 1.4), 32 * 1024 * 1024),
                         64 * 1024 * 1024))   # cap for v7x's 64 MiB VMEM

    in_specs = [
        pl.BlockSpec((tm_eff, E), lambda i, k: (i, 0)),     # x row tile
        pl.BlockSpec((E, ti_eff), lambda i, k: (0, k)),     # W1 gate half, streamed over I
        pl.BlockSpec((E, ti_eff), lambda i, k: (0, k)),     # W1 input half, streamed over I
        pl.BlockSpec((ti_eff, E), lambda i, k: (k, 0)),     # W3, streamed over I
    ]
    out_block = pl.BlockSpec((tm_eff, E), lambda i, k: (i, 0))   # accumulator output

    if emit_x_inp:
        kernel = _mlp_kernel_with_xinp
        out_shape = (jax.ShapeDtypeStruct((mpad, E), out_dtype),
                     jax.ShapeDtypeStruct((mpad, ipad), out_dtype))
        out_specs = [out_block,
                     pl.BlockSpec((tm_eff, ti_eff), lambda i, k: (i, k))]
    else:
        kernel = _mlp_kernel_no_xinp
        out_shape = jax.ShapeDtypeStruct((mpad, E), out_dtype)
        out_specs = out_block

    result = pl.pallas_call(
        kernel,
        out_shape=out_shape,
        grid_spec=pltpu.PrefetchScalarGridSpec(
            num_scalar_prefetch=0,
            grid=grid,
            in_specs=in_specs,
            out_specs=out_specs,
            scratch_shapes=[pltpu.VMEM((tm_eff, E), jnp.float32)],
        ),
        compiler_params=pltpu.CompilerParams(
            dimension_semantics=("parallel", "arbitrary"),
            vmem_limit_bytes=vmem_limit),
    )(x2d, wg, wi, w3)

    if emit_x_inp:
        out2d, xinp2d = result
        return out2d[:M, :], xinp2d[:M, :I]
    return result[:M, :], None


# ----------------------------------------------------------------------------
# Module-equivalent wrapper
# ----------------------------------------------------------------------------
class LLaMAMLPPallas:
    """JAX/Pallas equivalent of LLaMAMLP (default SwiGLU path, bias=False)."""

    def __init__(self, key, n_embd, intermediate_size, n_layer,
                 gmu_mlp=False, param_dtype=jnp.bfloat16):
        self.n_embd = n_embd
        self.intermediate_size = intermediate_size
        self.n_layer = n_layer
        self.gmu_mlp = gmu_mlp

        k1, k2 = jax.random.split(key)
        # PyTorch: w1 = Linear(n_embd, 2*intermediate_size), weight (2I, E)
        #          w3 = Linear(intermediate_size, n_embd),   weight (E, I)
        bound1 = 1.0 / (n_embd ** 0.5)
        bound3 = 1.0 / (intermediate_size ** 0.5)
        w1 = jax.random.uniform(k1, (2 * intermediate_size, n_embd),
                                minval=-bound1, maxval=bound1, dtype=jnp.float32)
        w3 = jax.random.uniform(k2, (n_embd, intermediate_size),
                                minval=-bound3, maxval=bound3, dtype=jnp.float32)
        # chunk(2, dim=-1) on w1(x) == split the (2I, E) weight along dim 0.
        w1_gate, w1_inp = jnp.split(w1, 2, axis=0)               # each (I, E)
        # Pre-transpose to (in, out) and store in compute dtype (bf16) so the
        # kernel's weight stream moves half the HBM bytes.
        self.wg = jnp.transpose(w1_gate).astype(param_dtype)     # (E, I)
        self.wi = jnp.transpose(w1_inp).astype(param_dtype)      # (E, I)
        self.w3 = jnp.transpose(w3).astype(param_dtype)          # (I, E)
        # TODO(synk): config.bias=True and relu2/legacy_swiglu branches not implemented
        # (LLaMA default path is SwiGLU with bias=False).

    def __call__(self, x, layer_idx, gmu_mems=None):
        B, T, E = x.shape
        x2d = x.reshape(B * T, E)
        emit = bool(self.gmu_mlp) and (layer_idx == self.n_layer // 2 + 1)
        out2d, xinp2d = llama_mlp_pallas(x2d, self.wg, self.wi, self.w3,
                                         emit_x_inp=emit)
        out = out2d.reshape(B, T, E)
        if emit:
            gmu_mems = xinp2d.reshape(B, T, self.intermediate_size)
        return out, gmu_mems


# ----------------------------------------------------------------------------
# Pure-JAX reference (f32 math on the bf16-rounded operands)
# ----------------------------------------------------------------------------
def _ref_forward(x2d, wg, wi, w3):
    xf = x2d.astype(jnp.bfloat16).astype(jnp.float32)
    wgf, wif, w3f = (w.astype(jnp.float32) for w in (wg, wi, w3))
    gate = xf @ wgf
    inp = xf @ wif
    h = (gate * jax.nn.sigmoid(gate)) * inp
    out = h.astype(jnp.bfloat16).astype(jnp.float32) @ w3f
    return out, inp


if __name__ == "__main__":
    # Small shapes consistent with the module.
    B, T = 2, 8
    n_embd = 32
    intermediate_size = 64
    n_layer = 4

    key = jax.random.PRNGKey(0)
    kx, kp = jax.random.split(key)
    x = jax.random.normal(kx, (B, T, n_embd), dtype=jnp.float32)

    # --- variant 1: ordinary layer (no x_inp emission) ---------------------
    mlp = LLaMAMLPPallas(kp, n_embd, intermediate_size, n_layer, gmu_mlp=False)
    out, gmu = mlp(x, layer_idx=0, gmu_mems=None)
    out = jax.block_until_ready(out)

    ref_out, ref_inp = _ref_forward(x.reshape(B * T, n_embd), mlp.wg, mlp.wi, mlp.w3)
    ref_out = ref_out.reshape(B, T, n_embd)
    assert out.shape == (B, T, n_embd)
    assert gmu is None
    assert jnp.allclose(out, ref_out, atol=2e-2, rtol=2e-2)

    # --- variant 2: the gmu layer also emits the pre-activation ------------
    mlp2 = LLaMAMLPPallas(kp, n_embd, intermediate_size, n_layer, gmu_mlp=True)
    gmu_layer = n_layer // 2 + 1
    out2, gmu2 = mlp2(x, layer_idx=gmu_layer, gmu_mems=None)
    out2, gmu2 = jax.block_until_ready((out2, gmu2))
    assert out2.shape == (B, T, n_embd)
    assert gmu2.shape == (B, T, intermediate_size)
    assert jnp.allclose(out2, ref_out, atol=2e-2, rtol=2e-2)
    assert jnp.allclose(gmu2.reshape(B * T, intermediate_size), ref_inp,
                        atol=2e-2, rtol=2e-2)

    print("KERNEL_OK")
</pallas_src>

<mosaic_0001>
module attributes {stable_mosaic.version = 11 : i64} {
  func.func @_mlp_kernel_no_xinp(%arg0: i32, %arg1: i32, %arg2: memref<16x32xbf16, #tpu.memory_space<vmem>>, %arg3: memref<32x64xbf16, #tpu.memory_space<vmem>>, %arg4: memref<32x64xbf16, #tpu.memory_space<vmem>>, %arg5: memref<64x32xbf16, #tpu.memory_space<vmem>>, %arg6: memref<16x32xf32, #tpu.memory_space<vmem>>, %arg7: memref<16x32xf32, #tpu.memory_space<vmem>>) attributes {dimension_semantics = [#tpu.dimension_semantics<parallel>, #tpu.dimension_semantics<arbitrary>], iteration_bounds = array<i64: 1, 1>, scalar_prefetch = 0 : i64, scratch_operands = 1 : i64, tpu.core_type = #tpu.core_type<tc>, window_params = [{transform_indices = @transform_0, window_bounds = array<i64: 16, 32>}, {transform_indices = @transform_1, window_bounds = array<i64: 32, 64>}, {transform_indices = @transform_2, window_bounds = array<i64: 32, 64>}, {transform_indices = @transform_3, window_bounds = array<i64: 64, 32>}, {transform_indices = @transform_4, window_bounds = array<i64: 16, 32>}]} {
    %c0_i32 = arith.constant 0 : i32
    %0 = arith.cmpi eq, %arg1, %c0_i32 : i32
    %1 = arith.extui %0 : i1 to i32
    %c0_i32_0 = arith.constant 0 : i32
    %2 = arith.cmpi ne, %1, %c0_i32_0 : i32
    scf.if %2 {
      %cst_17 = arith.constant 0.000000e+00 : f32
      %24 = vector.broadcast %cst_17 : f32 to vector<16x32xf32>
      %c0_18 = arith.constant 0 : index
      %c0_19 = arith.constant 0 : index
      %25 = vector.load %arg7[%c0_18, %c0_19] : memref<16x32xf32, #tpu.memory_space<vmem>>, vector<16x32xf32>
      tpu.vector_store %arg7[%c0_18, %c0_19], %24 {strides = array<i32>} : memref<16x32xf32, #tpu.memory_space<vmem>>, vector<16x32xf32>,
    } else {
    }
    %c0 = arith.constant 0 : index
    %c0_1 = arith.constant 0 : index
    %3 = vector.load %arg2[%c0, %c0_1] : memref<16x32xbf16, #tpu.memory_space<vmem>>, vector<16x32xbf16>
    %c0_2 = arith.constant 0 : index
    %c0_3 = arith.constant 0 : index
    %4 = vector.load %arg3[%c0_2, %c0_3] : memref<32x64xbf16, #tpu.memory_space<vmem>>, vector<32x64xbf16>
    %cst = arith.constant dense<0.000000e+00> : vector<16x64xf32>
    %5 = tpu.matmul %3, %4, %cst {dimension_numbers = #tpu.dot_dimension_numbers<[1], [0], [0], [1], [0, 0, 1, 1], [], []>} : vector<16x32xbf16>, vector<32x64xbf16>, vector<16x64xf32> -> vector<16x64xf32>
    %c0_4 = arith.constant 0 : index
    %c0_5 = arith.constant 0 : index
    %6 = vector.load %arg4[%c0_4, %c0_5] : memref<32x64xbf16, #tpu.memory_space<vmem>>, vector<32x64xbf16>
    %cst_6 = arith.constant dense<0.000000e+00> : vector<16x64xf32>
    %7 = tpu.matmul %3, %6, %cst_6 {dimension_numbers = #tpu.dot_dimension_numbers<[1], [0], [0], [1], [0, 0, 1, 1], [], []>} : vector<16x32xbf16>, vector<32x64xbf16>, vector<16x64xf32> -> vector<16x64xf32>
    %8 = arith.negf %5 : vector<16x64xf32>
    %9 = math.exp %8 : vector<16x64xf32>
    %cst_7 = arith.constant 1.000000e+00 : f32
    %10 = vector.broadcast %cst_7 : f32 to vector<16x64xf32>
    %11 = arith.addf %10, %9 : vector<16x64xf32>
    %12 = arith.divf %10, %11 : vector<16x64xf32>
    %13 = arith.mulf %5, %12 : vector<16x64xf32>
    %14 = arith.mulf %13, %7 : vector<16x64xf32>
    %c0_8 = arith.constant 0 : index
    %c0_9 = arith.constant 0 : index
    %15 = vector.load %arg7[%c0_8, %c0_9] : memref<16x32xf32, #tpu.memory_space<vmem>>, vector<16x32xf32>
    %16 = arith.truncf %14 : vector<16x64xf32> to vector<16x64xbf16>
    %c0_10 = arith.constant 0 : index
    %c0_11 = arith.constant 0 : index
    %17 = vector.load %arg5[%c0_10, %c0_11] : memref<64x32xbf16, #tpu.memory_space<vmem>>, vector<64x32xbf16>
    %cst_12 = arith.constant dense<0.000000e+00> : vector<16x32xf32>
    %18 = tpu.matmul %16, %17, %cst_12 {dimension_numbers = #tpu.dot_dimension_numbers<[1], [0], [0], [1], [0, 0, 1, 1], [], []>} : vector<16x64xbf16>, vector<64x32xbf16>, vector<16x32xf32> -> vector<16x32xf32>
    %19 = arith.addf %15, %18 : vector<16x32xf32>
    %c0_13 = arith.constant 0 : index
    %c0_14 = arith.constant 0 : index
    %20 = vector.load %arg7[%c0_13, %c0_14] : memref<16x32xf32, #tpu.memory_space<vmem>>, vector<16x32xf32>
    tpu.vector_store %arg7[%c0_13, %c0_14], %19 {strides = array<i32>} : memref<16x32xf32, #tpu.memory_space<vmem>>, vector<16x32xf32>,
    %c0_i32_15 = arith.constant 0 : i32
    %21 = arith.cmpi eq, %arg1, %c0_i32_15 : i32
    %22 = arith.extui %21 : i1 to i32
    %c0_i32_16 = arith.constant 0 : i32
    %23 = arith.cmpi ne, %22, %c0_i32_16 : i32
    scf.if %23 {
      %c0_17 = arith.constant 0 : index
      %c0_18 = arith.constant 0 : index
      %24 = vector.load %arg7[%c0_17, %c0_18] : memref<16x32xf32, #tpu.memory_space<vmem>>, vector<16x32xf32>
      %c0_19 = arith.constant 0 : index
      %c0_20 = arith.constant 0 : index
      %25 = vector.load %arg6[%c0_19, %c0_20] : memref<16x32xf32, #tpu.memory_space<vmem>>, vector<16x32xf32>
      tpu.vector_store %arg6[%c0_19, %c0_20], %24 {strides = array<i32>} : memref<16x32xf32, #tpu.memory_space<vmem>>, vector<16x32xf32>,
    } else {
    }
    return
  }
  func.func @transform_0(%arg0: i32, %arg1: i32) -> (i32, i32) {
    %c0_i32 = arith.constant 0 : i32
    %c0_i32_0 = arith.constant 0 : i32
    return %arg0, %c0_i32 : i32, i32
  }
  func.func @transform_1(%arg0: i32, %arg1: i32) -> (i32, i32) {
    %c0_i32 = arith.constant 0 : i32
    %c0_i32_0 = arith.constant 0 : i32
    return %c0_i32, %arg1 : i32, i32
  }
  func.func @transform_2(%arg0: i32, %arg1: i32) -> (i32, i32) {
    %c0_i32 = arith.constant 0 : i32
    %c0_i32_0 = arith.constant 0 : i32
    return %c0_i32, %arg1 : i32, i32
  }
  func.func @transform_3(%arg0: i32, %arg1: i32) -> (i32, i32) {
    %c0_i32 = arith.constant 0 : i32
    %c0_i32_0 = arith.constant 0 : i32
    return %arg1, %c0_i32 : i32, i32
  }
  func.func @transform_4(%arg0: i32, %arg1: i32) -> (i32, i32) {
    %c0_i32 = arith.constant 0 : i32
    %c0_i32_0 = arith.constant 0 : i32
    return %arg0, %c0_i32 : i32, i32
  }
}

</mosaic_0001>

<llo_original>
// kernel: llama_mlp_pallas.1
$region0: #{llama_mlp_pallas.1}
  #allocation0 [shape = 'u32[]', space=smem, size = 0x4, offset = 0x4, fixed_abs, tag = 'smem constant byte address 0x4 - core index']
  #allocation1 [shape = 'u32[144,128]{1,0:T(1,128)}', space=vmem, size = 0x12000, scoped, tag = 'internal scratch']
  #allocation2 [shape = 'f32[16,32]{1,0:T(8,128)}', space=vmem, size = 0x2000, scoped, tag = 'scratch operand']
  %s0 = inlined_call_operand.vmem [shape: bf16[16,32], index: 0, kind: input, shape index: {}]
  %s1 = inlined_call_operand.vmem [shape: bf16[32,64], index: 1, kind: input, shape index: {}]
  %s2 = inlined_call_operand.vmem [shape: bf16[32,64], index: 2, kind: input, shape index: {}]
  %s3 = inlined_call_operand.vmem [shape: bf16[64,32], index: 3, kind: input, shape index: {}]
  %s4 = inlined_call_operand.hbm [shape: f32[16,32], index: 4, kind: output, shape index: {}]
  %s5 = sld [smem:[#allocation0]]
  $region34: #{llama_mlp_pallas.1} parent=0
    _
  %s7 = ssub.s32 1, %s5
  %s8 = scalar_select 0, %s7, %s5
  $region1: #{llama_mlp_pallas.1} parent=0
    #allocation3 [shape = 'u8[8192]{0}', space=vmem, size = 0x2000, scoped, tag = 'output window, operand 0, single buffered']
    #allocation4 [shape = 's32[1]{0}', space=sflag, size = 0x4, scoped, tag = 'scoped memory for llama_mlp_pallas.1']
    %9 = vsyncpa [#allocation4], 0
    // Predicated region
    $region2: #{llama_mlp_pallas.1} parent=1 // pred_check
      _
    $region3: #{llama_mlp_pallas.1} parent=1 // pred_check_branch
      %11 = sbr.rel (0) target = $region5
    $region4: #{llama_mlp_pallas.1} parent=1 // pred_region
      _
    $region5: #{llama_mlp_pallas.1} parent=1 // pred_fallthru
      _
    // Predicated region
    $region6: #{llama_mlp_pallas.1} parent=1 // pred_check
      _
    $region7: #{llama_mlp_pallas.1} parent=1 // pred_check_branch
      %13 = sbr.rel (0) target = $region9
    $region8: #{llama_mlp_pallas.1} parent=1 // pred_region
      _
    $region9: #{llama_mlp_pallas.1} parent=1 // pred_fallthru
      _
    // Predicated region
    $region10: #{llama_mlp_pallas.1} parent=1 // pred_check
      _
    $region11: #{llama_mlp_pallas.1} parent=1 // pred_check_branch
      %15 = sbr.rel (0) target = $region13
    $region12: #{llama_mlp_pallas.1} parent=1 // pred_region
      _
    $region13: #{llama_mlp_pallas.1} parent=1 // pred_fallthru
      _
    // Predicated region
    $region14: #{llama_mlp_pallas.1} parent=1 // pred_check
      _
    $region15: #{llama_mlp_pallas.1} parent=1 // pred_check_branch
      %17 = sbr.rel (0) target = $region17
    $region16: #{llama_mlp_pallas.1} parent=1 // pred_region
      _
    $region17: #{llama_mlp_pallas.1} parent=1 // pred_fallthru
      _
    %p19 = scmp.eq.s32.totalorder 0, 0
    // Predicated region
    $region18: #{llama_mlp_pallas.1} parent=1 // pred_check
      %p20 = pneg %p19
    $region19: #{llama_mlp_pallas.1} parent=1 // pred_check_branch
      %22 = sbr.rel (%p20) target = $region21
    $region20: #{llama_mlp_pallas.1} parent=1 // pred_region
      %vm23 = vcmask 261120
      %24 = vst.msk [vmem:[#allocation2] sm:$0xff] %vm23, 0.0
      %25 = vst.msk [vmem:[#allocation2 + $0x8] sm:$0xff] %vm23, 0.0
    $region21: #{llama_mlp_pallas.1} parent=1 // pred_fallthru
      _
    %v26 = vld [vmem:[%s0] sm:$0xf]
    %v27 = vld [vmem:[%s0 + $0x4] sm:$0xf]
    %v28 = vld [vmem:[%s1] sm:$0xf]
    %v29 = vld [vmem:[%s1 + $0x4] sm:$0xf]
    %v30 = vld [vmem:[%s1 + $0x8] sm:$0xf]
    %v31 = vld [vmem:[%s1 + $0xc] sm:$0xf]
    %v34 = vunpack.c.l.b16 %v26
    %v35 = vunpack.c.l.b16 %v27
    %v36 = vpack.c.b16 %v35, %v34
    %v41 = vunpack.c.l.b16 %v28
    %v42 = vunpack.c.l.b16 %v29
    %v43 = vunpack.c.l.b16 %v30
    %v44 = vunpack.c.l.b16 %v31
    %v45 = vpack.c.b16 %v42, %v41
    %v46 = vpack.c.b16 %v44, %v43
    %vm49 = vcmask 261120
    %v51 = vsel %vm49, %v36, 0
    %53 = vmatprep.subr.bf16.mxu0 0
    %54 = vmatpush1.bf16.msra.mxu0 0
    %55 = vmatprep.subr.bf16.mxu0 0
    %56 = vmatpush1.bf16.msra.mxu0 0
    %57 = vmatprep.subr.bf16.mxu0 0
    %58 = vmatpush1.bf16.msra.mxu0 0
    %59 = vmatprep.subr.bf16.mxu0 0
    %60 = vmatpush1.bf16.msra.mxu0 0
    %61 = vmatprep.subr.bf16.mxu0 0
    %62 = vmatpush1.bf16.msra.mxu0 0
    %63 = vmatprep.subr.bf16.mxu0 0
    %64 = vmatpush1.bf16.msra.mxu0 0
    %65 = vmatprep.subr.bf16.mxu0 0
    %66 = vmatpush1.bf16.msra.mxu0 %v46
    %67 = vmatprep.subr.bf16.mxu0 0
    %68 = vmatpush1.bf16.msra.mxu0 %v45
    %69 = vmatprep.subr.bf16.mxu0 0
    %70 = vmatpush2.bf16.msra.mxu0 0
    %71 = vmatprep.subr.bf16.mxu0 0
    %72 = vmatpush2.bf16.msra.mxu0 0
    %73 = vmatprep.subr.bf16.mxu0 0
    %74 = vmatpush2.bf16.msra.mxu0 0
    %75 = vmatprep.subr.bf16.mxu0 0
    %76 = vmatpush2.bf16.msra.mxu0 0
    %77 = vmatprep.subr.bf16.mxu0 0
    %78 = vmatpush2.bf16.msra.mxu0 0
    %79 = vmatprep.subr.bf16.mxu0 0
    %80 = vmatpush2.bf16.msra.mxu0 0
    %81 = vmatprep.subr.bf16.mxu0 0
    %82 = vmatpush2.bf16.msra.mxu0 0
    %83 = vmatprep.subr.bf16.mxu0 0
    %84 = vmatpush2.bf16.msra.mxu0 0
    %85 = vmatprep.mubr.bf16.mxu0 0
    %86 = vmatmul.mubr.bf16.gmra.mxu0 %v51
    %v87 = vpop.f32.mrf.mxu0
    %v88 = vadd.f32 0.0, %v87
    %v89 = vpop.f32.mrf.mxu0
    %v90 = vpop.f32.mrf.mxu0
    %v91 = vadd.f32 0.0, %v90
    %v92 = vpop.f32.mrf.mxu0
    %93 = vdwg.mxu0
    %v94 = vld [vmem:[%s2] sm:$0xf]
    %v95 = vld [vmem:[%s2 + $0x4] sm:$0xf]
    %v96 = vld [vmem:[%s2 + $0x8] sm:$0xf]
    %v97 = vld [vmem:[%s2 + $0xc] sm:$0xf]
    %v102 = vunpack.c.l.b16 %v94
    %v103 = vunpack.c.l.b16 %v95
    %v104 = vunpack.c.l.b16 %v96
    %v105 = vunpack.c.l.b16 %v97
    %v106 = vpack.c.b16 %v103, %v102
    %v107 = vpack.c.b16 %v105, %v104
    %110 = vmatprep.subr.bf16.mxu0 0
    %111 = vmatpush1.bf16.msra.mxu0 0
    %112 = vmatprep.subr.bf16.mxu0 0
    %113 = vmatpush1.bf16.msra.mxu0 0
    %114 = vmatprep.subr.bf16.mxu0 0
    %115 = vmatpush1.bf16.msra.mxu0 0
    %116 = vmatprep.subr.bf16.mxu0 0
    %117 = vmatpush1.bf16.msra.mxu0 0
    %118 = vmatprep.subr.bf16.mxu0 0
    %119 = vmatpush1.bf16.msra.mxu0 0
    %120 = vmatprep.subr.bf16.mxu0 0
    %121 = vmatpush1.bf16.msra.mxu0 0
    %122 = vmatprep.subr.bf16.mxu0 0
    %123 = vmatpush1.bf16.msra.mxu0 %v107
    %124 = vmatprep.subr.bf16.mxu0 0
    %125 = vmatpush1.bf16.msra.mxu0 %v106
    %126 = vmatprep.subr.bf16.mxu0 0
    %127 = vmatpush2.bf16.msra.mxu0 0
    %128 = vmatprep.subr.bf16.mxu0 0
    %129 = vmatpush2.bf16.msra.mxu0 0
    %130 = vmatprep.subr.bf16.mxu0 0
    %131 = vmatpush2.bf16.msra.mxu0 0
    %132 = vmatprep.subr.bf16.mxu0 0
    %133 = vmatpush2.bf16.msra.mxu0 0
    %134 = vmatprep.subr.bf16.mxu0 0
    %135 = vmatpush2.bf16.msra.mxu0 0
    %136 = vmatprep.subr.bf16.mxu0 0
    %137 = vmatpush2.bf16.msra.mxu0 0
    %138 = vmatprep.subr.bf16.mxu0 0
    %139 = vmatpush2.bf16.msra.mxu0 0
    %140 = vmatprep.subr.bf16.mxu0 0
    %141 = vmatpush2.bf16.msra.mxu0 0
    %142 = vmatprep.mubr.bf16.mxu0 0
    %143 = vmatmul.mubr.bf16.gmra.mxu0 %v51
    %v144 = vpop.f32.mrf.mxu0
    %v145 = vadd.f32 0.0, %v144
    %v146 = vpop.f32.mrf.mxu0
    %v147 = vpop.f32.mrf.mxu0
    %v148 = vadd.f32 0.0, %v147
    %v149 = vpop.f32.mrf.mxu0
    %150 = vdwg.mxu0
    %v151 = vxor.u32 %v88, 2147483648
    %v152 = vxor.u32 %v91, 2147483648
    %v153 = vmul.f32 %v151, 1.442695
    %v154 = vpow.pop %v153
    %v155 = vmul.f32 %v152, 1.442695
    %v156 = vpow.pop %v155
    %v157 = vadd.f32 %v154, 1.0
    %v158 = vadd.f32 %v156, 1.0
    %v159 = vrcp.pop %v157
    %v160 = vmul.f32 1.0, %v159
    %v161 = vrcp.pop %v158
    %v162 = vmul.f32 1.0, %v161
    %v163 = vmul.f32 %v88, %v160
    %v164 = vmul.f32 %v91, %v162
    %v165 = vmul.f32 %v163, %v145
    %v166 = vmul.f32 %v164, %v148
    %v167 = vld [vmem:[#allocation2] sm:$0xff]
    %v168 = vld [vmem:[#allocation2 + $0x8] sm:$0xff]
    %v169 = vpack.c.bf16 %v166, %v165
    %v170 = vld [vmem:[%s3] sm:$0xf]
    %v171 = vld [vmem:[%s3 + $0x4] sm:$0xf]
    %v172 = vld [vmem:[%s3 + $0x8] sm:$0xf]
    %v173 = vld [vmem:[%s3 + $0xc] sm:$0xf]
    %v174 = vld [vmem:[%s3 + $0x10] sm:$0xf]
    %v175 = vld [vmem:[%s3 + $0x14] sm:$0xf]
    %v176 = vld [vmem:[%s3 + $0x18] sm:$0xf]
    %v177 = vld [vmem:[%s3 + $0x1c] sm:$0xf]
    %v186 = vunpack.c.l.b16 %v170
    %v187 = vunpack.c.l.b16 %v171
    %v188 = vunpack.c.l.b16 %v172
    %v189 = vunpack.c.l.b16 %v173
    %v190 = vunpack.c.l.b16 %v174
    %v191 = vunpack.c.l.b16 %v175
    %v192 = vunpack.c.l.b16 %v176
    %v193 = vunpack.c.l.b16 %v177
    %v194 = vpack.c.b16 %v187, %v186
    %v195 = vpack.c.b16 %v189, %v188
    %v196 = vpack.c.b16 %v191, %v190
    %v197 = vpack.c.b16 %v193, %v192
    %vm202 = vcmask 523264
    %v204 = vsel %vm202, %v169, 0
    %206 = vmatprep.subr.bf16.mxu0 0
    %207 = vmatpush1.bf16.msra.mxu0 0
    %208 = vmatprep.subr.bf16.mxu0 0
    %209 = vmatpush1.bf16.msra.mxu0 0
    %210 = vmatprep.subr.bf16.mxu0 0
    %211 = vmatpush1.bf16.msra.mxu0 0
    %212 = vmatprep.subr.bf16.mxu0 0
    %213 = vmatpush1.bf16.msra.mxu0 0
    %214 = vmatprep.subr.bf16.mxu0 0
    %215 = vmatpush1.bf16.msra.mxu0 %v197
    %216 = vmatprep.subr.bf16.mxu0 0
    %217 = vmatpush1.bf16.msra.mxu0 %v196
    %218 = vmatprep.subr.bf16.mxu0 0
    %219 = vmatpush1.bf16.msra.mxu0 %v195
    %220 = vmatprep.subr.bf16.mxu0 0
    %221 = vmatpush1.bf16.msra.mxu0 %v194
    %222 = vmatprep.subr.bf16.mxu0 0
    %223 = vmatpush2.bf16.msra.mxu0 0
    %224 = vmatprep.subr.bf16.mxu0 0
    %225 = vmatpush2.bf16.msra.mxu0 0
    %226 = vmatprep.subr.bf16.mxu0 0
    %227 = vmatpush2.bf16.msra.mxu0 0
    %228 = vmatprep.subr.bf16.mxu0 0
    %229 = vmatpush2.bf16.msra.mxu0 0
    %230 = vmatprep.subr.bf16.mxu0 0
    %231 = vmatpush2.bf16.msra.mxu0 0
    %232 = vmatprep.subr.bf16.mxu0 0
    %233 = vmatpush2.bf16.msra.mxu0 0
    %234 = vmatprep.subr.bf16.mxu0 0
    %235 = vmatpush2.bf16.msra.mxu0 0
    %236 = vmatprep.subr.bf16.mxu0 0
    %237 = vmatpush2.bf16.msra.mxu0 0
    %238 = vmatprep.mubr.bf16.mxu0 0
    %239 = vmatmul.mubr.bf16.gmra.mxu0 %v204
    %v240 = vpop.f32.mrf.mxu0
    %v241 = vadd.f32 0.0, %v240
    %v242 = vpop.f32.mrf.mxu0
    %v243 = vpop.f32.mrf.mxu0
    %v244 = vadd.f32 0.0, %v243
    %v245 = vpop.f32.mrf.mxu0
    %246 = vdwg.mxu0
    %v247 = vadd.f32 %v167, %v241
    %v248 = vadd.f32 %v168, %v244
    %249 = vst.msk [vmem:[#allocation2] sm:$0xff] %vm49, %v247
    %250 = vst.msk [vmem:[#allocation2 + $0x8] sm:$0xff] %vm49, %v248
    // Predicated region
    $region22: #{llama_mlp_pallas.1} parent=1 // pred_check
      %p251 = pneg %p19
    $region23: #{llama_mlp_pallas.1} parent=1 // pred_check_branch
      %253 = sbr.rel (%p251) target = $region25
    $region24: #{llama_mlp_pallas.1} parent=1 // pred_region
      %v254 = vld [vmem:[#allocation2] sm:$0xff]
      %v255 = vld [vmem:[#allocation2 + $0x8] sm:$0xff]
      %256 = vst.msk [vmem:[#allocation3] sm:$0xff] %vm49, %v254
      %257 = vst.msk [vmem:[#allocation3 + $0x8] sm:$0xff] %vm49, %v255
    $region25: #{llama_mlp_pallas.1} parent=1 // pred_fallthru
      _
    // Predicated region
    $region26: #{llama_mlp_pallas.1} parent=1 // pred_check
      _
    $region27: #{llama_mlp_pallas.1} parent=1 // pred_check_branch
      %259 = sbr.rel (0) target = $region29
    $region28: #{llama_mlp_pallas.1} parent=1 // pred_region
      %s261 = ssub.s32 256, 256
      %262 = vsyncadd [#allocation4], %s261
      %s263 = sshll.u32 [#allocation3], 4
      %s264 = int_to_ptr.vmem [resolvable:$true] %s263
      %269 = dma.vmem_to_hbm [thread:$0]  %s264, 256, %s4, [#allocation4], 128, 128, 8
    $region29: #{llama_mlp_pallas.1} parent=1 // pred_fallthru
      _
    // Predicated region
    $region30: #{llama_mlp_pallas.1} parent=1 // pred_check
      _
    $region31: #{llama_mlp_pallas.1} parent=1 // pred_check_branch
      %271 = sbr.rel (0) target = $region33
    $region32: #{llama_mlp_pallas.1} parent=1 // pred_region
      %272 = dma.done [#allocation4], 256
    $region33: #{llama_mlp_pallas.1} parent=1 // pred_fallthru
      _
    %273 = vsyncpa [#allocation4], 1

</llo_original>
